<compile_context>
chip_gen: v5e
topology: v5e:2x2
jax: 0.10.0
libtpu: 0.0.40
codegen_flags: <defaults>
</compile_context>

<pallas_src>
import jax
import jax.numpy as jnp
from jax.experimental import pallas as pl
from jax.experimental.pallas import tpu as pltpu


# ---------------------------------------------------------------------------
# Kernel 1: batch-global interaction scalar over lane-dense (rows, 128) tiles.
#   out[0,0] = sum(gu * gi) over the whole (padded) batch.
# ---------------------------------------------------------------------------
def _interaction_kernel(gu_ref, gi_ref, out_ref, acc_ref):
    @pl.when(pl.program_id(0) == 0)
    def _():
        acc_ref[...] = jnp.zeros_like(acc_ref)

    acc_ref[...] += gu_ref[...] * gi_ref[...]          # pure VPU FMA per step

    @pl.when(pl.program_id(0) == pl.num_programs(0) - 1)
    def _():
        out_ref[...] = jnp.sum(acc_ref[...], keepdims=True)   # one XLU reduce


# ---------------------------------------------------------------------------
# Kernel 2: per-row terms, lane-dense (batch on the lane axis).
#   out[0, b] = const + userBias[b] + itemBias[b] + sum_f w[f] * feature[b, f]
# where const = alpha + fit_bias + interaction (single SMEM scalar).
# F is tiny (3) and static -> unrolled VPU multiply-adds on (1, TILE_B) rows.
# ---------------------------------------------------------------------------
def _row_kernel(const_ref, w_ref, ub_ref, ib_ref, feat_t_ref, out_ref):
    acc = const_ref[0, 0] + ub_ref[...] + ib_ref[...]          # (1, TILE_B)
    n_feat = feat_t_ref.shape[0]
    fit = w_ref[0, 0] * feat_t_ref[0:1, :]
    for f in range(1, n_feat):                                 # static unroll, F == 3
        fit = fit + w_ref[0, f] * feat_t_ref[f:f + 1, :]
    out_ref[...] = acc + fit


def _pad_axis(x, axis, target):
    pad = target - x.shape[axis]
    if pad == 0:
        return x
    widths = [(0, 0)] * x.ndim
    widths[axis] = (0, pad)
    return jnp.pad(x, widths)


def latent_factor_forward(params, users, items, feature, *, tile_b=1024, tile_r=512):
    alpha = params["alpha"]            # (1,)
    user_bias = params["userBias"]     # (num_users, 1)
    item_bias = params["itemBias"]     # (1, num_items)
    gamma_user = params["gamma_user"]  # (num_users, K)
    gamma_item = params["gamma_item"]  # (K, num_items)
    fit_w = params["fit_w"]            # (1, F)  -- torch Linear weight layout
    fit_b = params["fit_b"]            # (1,)

    B = users.shape[0]
    K = gamma_user.shape[1]
    F = feature.shape[1]

    # --- batch tiling for the per-row kernel (lane axis = batch) --------------
    tile_b = max(128, min(tile_b, pl.cdiv(B, 128) * 128))
    assert tile_b % 128 == 0
    n_tiles = pl.cdiv(B, tile_b)
    bp = n_tiles * tile_b

    # --- JAX glue: data-dependent gathers + layout plumbing -------------------
    # TODO(synk): the gamma/bias gathers stay in XLA; Element-block per-row DMA
    # would serialize B tiny DMAs and lose to the fused XLA gather.
    gu = gamma_user[users, :].reshape(-1)                                    # (B*K,)
    gi = jnp.transpose(gamma_item[:, items], (1, 0)).reshape(-1)             # (B*K,)
    ub = _pad_axis(user_bias[users, 0][None, :], 1, bp)                      # (1, Bp) lane-dense
    ib = _pad_axis(item_bias[0, items][None, :], 1, bp)                      # (1, Bp) lane-dense
    feat_t = _pad_axis(jnp.transpose(feature, (1, 0)), 1, bp)                # (F, Bp) lane-dense

    # --- lane-dense tiling for the interaction reduce --------------------------
    # Flatten to (rows, 128) so all 128 lanes carry useful data even when K < 128.
    rows = pl.cdiv(B * K, 128)
    tile_r = min(tile_r, pl.cdiv(rows, 8) * 8)          # multiple of 8 sublanes
    n_inter = pl.cdiv(rows, tile_r)
    rows_p = n_inter * tile_r
    gu_2d = _pad_axis(gu, 0, rows_p * 128).reshape(rows_p, 128)
    gi_2d = _pad_axis(gi, 0, rows_p * 128).reshape(rows_p, 128)

    smem = pltpu.MemorySpace.SMEM
    vmem_limit = 32 * 1024 * 1024  # safe on v5e/v6e/v7x, far above what these tiles need

    # --- Kernel 1: batch-global interaction scalar ----------------------------
    inter = pl.pallas_call(
        _interaction_kernel,
        out_shape=jax.ShapeDtypeStruct((1, 1), jnp.float32),
        grid_spec=pltpu.PrefetchScalarGridSpec(
            num_scalar_prefetch=0,
            grid=(n_inter,),
            in_specs=[
                pl.BlockSpec((tile_r, 128), lambda i: (i, 0)),
                pl.BlockSpec((tile_r, 128), lambda i: (i, 0)),
            ],
            out_specs=pl.BlockSpec((1, 1), lambda i: (0, 0)),
            scratch_shapes=[pltpu.VMEM((tile_r, 128), jnp.float32)],
        ),
        compiler_params=pltpu.CompilerParams(
            dimension_semantics=("arbitrary",),
            vmem_limit_bytes=vmem_limit,
        ),
    )(gu_2d, gi_2d)

    # Fold the three scalars once: alpha + linear bias + interaction.
    const = (alpha[0] + fit_b[0] + inter[0, 0]).reshape(1, 1).astype(jnp.float32)

    # --- Kernel 2: per-row terms, B-tiled, lane-dense output -------------------
    out = pl.pallas_call(
        _row_kernel,
        out_shape=jax.ShapeDtypeStruct((1, bp), jnp.float32),
        grid_spec=pltpu.PrefetchScalarGridSpec(
            num_scalar_prefetch=0,
            grid=(n_tiles,),
            in_specs=[
                pl.BlockSpec((1, 1), lambda i: (0, 0), memory_space=smem),   # const scalar
                pl.BlockSpec((1, F), lambda i: (0, 0), memory_space=smem),   # fit weights
                pl.BlockSpec((1, tile_b), lambda i: (0, i)),                 # userBias (lane-dense)
                pl.BlockSpec((1, tile_b), lambda i: (0, i)),                 # itemBias (lane-dense)
                pl.BlockSpec((F, tile_b), lambda i: (0, i)),                 # feature^T (lane-dense)
            ],
            out_specs=pl.BlockSpec((1, tile_b), lambda i: (0, i)),
        ),
        compiler_params=pltpu.CompilerParams(
            dimension_semantics=("parallel",),
            vmem_limit_bytes=vmem_limit,
        ),
    )(const, fit_w, ub, ib, feat_t)

    return out[0, :B]  # (B,)


def reference_forward(params, users, items, feature):
    alpha = params["alpha"]
    ub = params["userBias"][users, 0]
    ib = params["itemBias"][0, items]
    inter = jnp.sum(params["gamma_user"][users, :]
                    * jnp.transpose(params["gamma_item"][:, items], (1, 0)))
    fit = feature @ params["fit_w"].T + params["fit_b"]   # (B, 1)
    return alpha + ub + ib + inter + fit[:, 0]


if __name__ == "__main__":
    # Small deterministic setup consistent with __init__(num_users, num_items, K, alpha).
    num_users, num_items, K, alpha_val = 64, 64, 32, 0.5
    wordBag_size = 0
    F = 3 + wordBag_size
    B = 256  # enough to exercise a 2-step lane-dense grid with tile_b=128

    key = jax.random.PRNGKey(0)
    k_ub, k_ib, k_gu, k_gi, k_w, k_b, k_feat, k_u, k_i = jax.random.split(key, 9)

    # NOTE: the torch module initializes biases/gammas to zeros; small random
    # values are used so every term is exercised nontrivially.
    params = {
        "alpha":      jnp.array([alpha_val], dtype=jnp.float32),
        "userBias":   0.1 * jax.random.normal(k_ub, (num_users, 1), jnp.float32),
        "itemBias":   0.1 * jax.random.normal(k_ib, (1, num_items), jnp.float32),
        "gamma_user": 0.1 * jax.random.normal(k_gu, (num_users, K), jnp.float32),
        "gamma_item": 0.1 * jax.random.normal(k_gi, (K, num_items), jnp.float32),
        "fit_w":      0.1 * jax.random.normal(k_w, (1, F), jnp.float32),
        "fit_b":      0.1 * jax.random.normal(k_b, (1,), jnp.float32),
    }

    users = jax.random.randint(k_u, (B,), 0, num_users)
    items = jax.random.randint(k_i, (B,), 0, num_items)
    feature = jax.random.normal(k_feat, (B, F), jnp.float32)

    out = latent_factor_forward(params, users, items, feature, tile_b=128)
    out = jax.block_until_ready(out)

    ref = reference_forward(params, users, items, feature)
    assert out.shape == (B,)
    assert jnp.allclose(out, ref, atol=1e-5, rtol=1e-5), (out, ref)

    print("KERNEL_OK")
</pallas_src>

<mosaic_0001>
module attributes {stable_mosaic.version = 11 : i64} {
  func.func @_interaction_kernel(%arg0: i32, %arg1: memref<64x128xf32, #tpu.memory_space<vmem>>, %arg2: memref<64x128xf32, #tpu.memory_space<vmem>>, %arg3: memref<1x1xf32, #tpu.memory_space<vmem>>, %arg4: memref<64x128xf32, #tpu.memory_space<vmem>>) attributes {dimension_semantics = [#tpu.dimension_semantics<arbitrary>], iteration_bounds = array<i64: 1>, scalar_prefetch = 0 : i64, scratch_operands = 1 : i64, tpu.core_type = #tpu.core_type<tc>, window_params = [{transform_indices = @transform_0, window_bounds = array<i64: 64, 128>}, {transform_indices = @transform_1, window_bounds = array<i64: 64, 128>}, {pipeline_mode = #tpu.pipeline_mode<synchronous>, transform_indices = @transform_2, window_bounds = array<i64: 1, 1>}]} {
    %c0_i32 = arith.constant 0 : i32
    %0 = arith.cmpi eq, %arg0, %c0_i32 : i32
    %1 = arith.extui %0 : i1 to i32
    %c0_i32_0 = arith.constant 0 : i32
    %2 = arith.cmpi ne, %1, %c0_i32_0 : i32
    scf.if %2 {
      %cst = arith.constant 0.000000e+00 : f32
      %12 = vector.broadcast %cst : f32 to vector<64x128xf32>
      %c0_10 = arith.constant 0 : index
      %c0_11 = arith.constant 0 : index
      %13 = vector.load %arg4[%c0_10, %c0_11] : memref<64x128xf32, #tpu.memory_space<vmem>>, vector<64x128xf32>
      tpu.vector_store %arg4[%c0_10, %c0_11], %12 {strides = array<i32>} : memref<64x128xf32, #tpu.memory_space<vmem>>, vector<64x128xf32>,
    } else {
    }
    %c0 = arith.constant 0 : index
    %c0_1 = arith.constant 0 : index
    %3 = vector.load %arg4[%c0, %c0_1] : memref<64x128xf32, #tpu.memory_space<vmem>>, vector<64x128xf32>
    %c0_2 = arith.constant 0 : index
    %c0_3 = arith.constant 0 : index
    %4 = vector.load %arg1[%c0_2, %c0_3] : memref<64x128xf32, #tpu.memory_space<vmem>>, vector<64x128xf32>
    %c0_4 = arith.constant 0 : index
    %c0_5 = arith.constant 0 : index
    %5 = vector.load %arg2[%c0_4, %c0_5] : memref<64x128xf32, #tpu.memory_space<vmem>>, vector<64x128xf32>
    %6 = arith.mulf %4, %5 : vector<64x128xf32>
    %7 = arith.addf %3, %6 : vector<64x128xf32>
    %c0_6 = arith.constant 0 : index
    %c0_7 = arith.constant 0 : index
    %8 = vector.load %arg4[%c0_6, %c0_7] : memref<64x128xf32, #tpu.memory_space<vmem>>, vector<64x128xf32>
    tpu.vector_store %arg4[%c0_6, %c0_7], %7 {strides = array<i32>} : memref<64x128xf32, #tpu.memory_space<vmem>>, vector<64x128xf32>,
    %c0_i32_8 = arith.constant 0 : i32
    %9 = arith.cmpi eq, %arg0, %c0_i32_8 : i32
    %10 = arith.extui %9 : i1 to i32
    %c0_i32_9 = arith.constant 0 : i32
    %11 = arith.cmpi ne, %10, %c0_i32_9 : i32
    scf.if %11 {
      %c0_10 = arith.constant 0 : index
      %c0_11 = arith.constant 0 : index
      %12 = vector.load %arg4[%c0_10, %c0_11] : memref<64x128xf32, #tpu.memory_space<vmem>>, vector<64x128xf32>
      %13 = vector.shape_cast %12 : vector<64x128xf32> to vector<1x64x128xf32>
      %cst = arith.constant dense<0.000000e+00> : vector<1xf32>
      %14 = vector.multi_reduction <add>, %13, %cst [1, 2] : vector<1x64x128xf32> to vector<1xf32>
      %15 = vector.shape_cast %14 : vector<1xf32> to vector<1x1x1xf32>
      %16 = vector.extract %15[0, 0, 0] : f32 from vector<1x1x1xf32>
      %17 = vector.broadcast %16 : f32 to vector<1x1xf32>
      %c0_12 = arith.constant 0 : index
      %c0_13 = arith.constant 0 : index
      %18 = vector.load %arg3[%c0_12, %c0_13] : memref<1x1xf32, #tpu.memory_space<vmem>>, vector<1x1xf32>
      tpu.vector_store %arg3[%c0_12, %c0_13], %17 {strides = array<i32>} : memref<1x1xf32, #tpu.memory_space<vmem>>, vector<1x1xf32>,
    } else {
    }
    return
  }
  func.func @transform_0(%arg0: i32) -> (i32, i32) {
    %c0_i32 = arith.constant 0 : i32
    %c0_i32_0 = arith.constant 0 : i32
    return %arg0, %c0_i32 : i32, i32
  }
  func.func @transform_1(%arg0: i32) -> (i32, i32) {
    %c0_i32 = arith.constant 0 : i32
    %c0_i32_0 = arith.constant 0 : i32
    return %arg0, %c0_i32 : i32, i32
  }
  func.func @transform_2(%arg0: i32) -> (i32, i32) {
    %c0_i32 = arith.constant 0 : i32
    %c0_i32_0 = arith.constant 0 : i32
    %c0_i32_1 = arith.constant 0 : i32
    return %c0_i32, %c0_i32_0 : i32, i32
  }
}

</mosaic_0001>

<llo_original>
// kernel: tpu_custom_call.1
$region0: #{tpu_custom_call.1}
  #allocation0 [shape = 'u32[]', space=smem, size = 0x4, offset = 0x4, fixed_abs, tag = 'smem constant byte address 0x4 - core index']
  #allocation1 [shape = 'u32[72,128]{1,0:T(1,128)}', space=vmem, size = 0x9000, scoped, tag = 'internal scratch']
  #allocation2 [shape = 'f32[64,128]{1,0:T(8,128)}', space=vmem, size = 0x8000, scoped, tag = 'scratch operand']
  %s0 = inlined_call_operand.hbm [shape: f32[64,128], index: 0, kind: input, shape index: {}]
  %s1 = inlined_call_operand.hbm [shape: f32[64,128], index: 1, kind: input, shape index: {}]
  %s2 = inlined_call_operand.hbm [shape: f32[1,1], index: 2, kind: output, shape index: {}]
  %s3 = sld [smem:[#allocation0]]
  $region34: #{tpu_custom_call.1} parent=0
    _
  %s5 = ssub.s32 1, %s3
  %s6 = scalar_select 0, %s5, %s3
  $region1: #{tpu_custom_call.1} parent=0
    #allocation3 [shape = 'u8[32768]{0}', space=vmem, size = 0x8000, scoped, tag = 'input window, operand 0, single buffered']
    #allocation4 [shape = 's32[1]{0}', space=sflag, size = 0x4, scoped, tag = 'scoped memory for tpu_custom_call.1']
    #allocation5 [shape = 's32[1]{0}', space=sflag, size = 0x4, scoped, tag = 'scoped memory for tpu_custom_call.1']
    #allocation6 [shape = 'u8[32768]{0}', space=vmem, size = 0x8000, scoped, tag = 'input window, operand 1, single buffered']
    #allocation7 [shape = 's32[1]{0}', space=sflag, size = 0x4, scoped, tag = 'scoped memory for tpu_custom_call.1']
    #allocation8 [shape = 'u8[512]{0}', space=vmem, size = 0x400, scoped, tag = 'output window, operand 0, single buffered']
    %7 = vsyncpa [#allocation4], 0
    %8 = vsyncpa [#allocation7], 0
    %9 = vsyncpa [#allocation5], 0
    // Predicated region
    $region2: #{tpu_custom_call.1} parent=1 // pred_check
      _
    $region3: #{tpu_custom_call.1} parent=1 // pred_check_branch
      %11 = sbr.rel (0) target = $region5
    $region4: #{tpu_custom_call.1} parent=1 // pred_region
      %13 = vsyncadd [#allocation4], 0
      %s14 = sshll.u32 %s0, 4
      %s15 = int_to_ptr.hbm [resolvable:$true] %s14
      %s16 = sshll.u32 [#allocation3], 4
      %s17 = int_to_ptr.vmem [resolvable:$true] %s16
      %22 = dma.hbm_to_vmem [thread:$0]  %s15, 1024, %s17, [#allocation4], 128, 128, 8
    $region5: #{tpu_custom_call.1} parent=1 // pred_fallthru
      _
    // Predicated region
    $region6: #{tpu_custom_call.1} parent=1 // pred_check
      _
    $region7: #{tpu_custom_call.1} parent=1 // pred_check_branch
      %24 = sbr.rel (0) target = $region9
    $region8: #{tpu_custom_call.1} parent=1 // pred_region
      %26 = vsyncadd [#allocation7], 0
      %s27 = sshll.u32 %s1, 4
      %s28 = int_to_ptr.hbm [resolvable:$true] %s27
      %s29 = sshll.u32 [#allocation6], 4
      %s30 = int_to_ptr.vmem [resolvable:$true] %s29
      %35 = dma.hbm_to_vmem [thread:$0]  %s28, 1024, %s30, [#allocation7], 128, 128, 8
    $region9: #{tpu_custom_call.1} parent=1 // pred_fallthru
      _
    // Predicated region
    $region10: #{tpu_custom_call.1} parent=1 // pred_check
      _
    $region11: #{tpu_custom_call.1} parent=1 // pred_check_branch
      %37 = sbr.rel (0) target = $region13
    $region12: #{tpu_custom_call.1} parent=1 // pred_region
      %39 = dma.done [#allocation4], 1024
    $region13: #{tpu_custom_call.1} parent=1 // pred_fallthru
      _
    // Predicated region
    $region14: #{tpu_custom_call.1} parent=1 // pred_check
      _
    $region15: #{tpu_custom_call.1} parent=1 // pred_check_branch
      %41 = sbr.rel (0) target = $region17
    $region16: #{tpu_custom_call.1} parent=1 // pred_region
      %43 = dma.done [#allocation7], 1024
    $region17: #{tpu_custom_call.1} parent=1 // pred_fallthru
      _
    %p44 = scmp.eq.s32.totalorder 0, 0
    // Predicated region
    $region18: #{tpu_custom_call.1} parent=1 // pred_check
      %p45 = pneg %p44
    $region19: #{tpu_custom_call.1} parent=1 // pred_check_branch
      %47 = sbr.rel (%p45) target = $region21
    $region20: #{tpu_custom_call.1} parent=1 // pred_region
      %48 = vst [vmem:[#allocation2] sm:$0xff] 0.0
      %49 = vst [vmem:[#allocation2 + $0x8] sm:$0xff] 0.0
      %50 = vst [vmem:[#allocation2 + $0x10] sm:$0xff] 0.0
      %51 = vst [vmem:[#allocation2 + $0x18] sm:$0xff] 0.0
      %52 = vst [vmem:[#allocation2 + $0x20] sm:$0xff] 0.0
      %53 = vst [vmem:[#allocation2 + $0x28] sm:$0xff] 0.0
      %54 = vst [vmem:[#allocation2 + $0x30] sm:$0xff] 0.0
      %55 = vst [vmem:[#allocation2 + $0x38] sm:$0xff] 0.0
    $region21: #{tpu_custom_call.1} parent=1 // pred_fallthru
      _
    %v56 = vld [vmem:[#allocation2] sm:$0xff]
    %v57 = vld [vmem:[#allocation2 + $0x8] sm:$0xff]
    %v58 = vld [vmem:[#allocation2 + $0x10] sm:$0xff]
    %v59 = vld [vmem:[#allocation2 + $0x18] sm:$0xff]
    %v60 = vld [vmem:[#allocation2 + $0x20] sm:$0xff]
    %v61 = vld [vmem:[#allocation2 + $0x28] sm:$0xff]
    %v62 = vld [vmem:[#allocation2 + $0x30] sm:$0xff]
    %v63 = vld [vmem:[#allocation2 + $0x38] sm:$0xff]
    %v64 = vld [vmem:[#allocation3] sm:$0xff]
    %v65 = vld [vmem:[#allocation3 + $0x8] sm:$0xff]
    %v66 = vld [vmem:[#allocation3 + $0x10] sm:$0xff]
    %v67 = vld [vmem:[#allocation3 + $0x18] sm:$0xff]
    %v68 = vld [vmem:[#allocation3 + $0x20] sm:$0xff]
    %v69 = vld [vmem:[#allocation3 + $0x28] sm:$0xff]
    %v70 = vld [vmem:[#allocation3 + $0x30] sm:$0xff]
    %v71 = vld [vmem:[#allocation3 + $0x38] sm:$0xff]
    %v72 = vld [vmem:[#allocation6] sm:$0xff]
    %v73 = vld [vmem:[#allocation6 + $0x8] sm:$0xff]
    %v74 = vld [vmem:[#allocation6 + $0x10] sm:$0xff]
    %v75 = vld [vmem:[#allocation6 + $0x18] sm:$0xff]
    %v76 = vld [vmem:[#allocation6 + $0x20] sm:$0xff]
    %v77 = vld [vmem:[#allocation6 + $0x28] sm:$0xff]
    %v78 = vld [vmem:[#allocation6 + $0x30] sm:$0xff]
    %v79 = vld [vmem:[#allocation6 + $0x38] sm:$0xff]
    %v80 = vmul.f32 %v64, %v72
    %v81 = vmul.f32 %v65, %v73
    %v82 = vmul.f32 %v66, %v74
    %v83 = vmul.f32 %v67, %v75
    %v84 = vmul.f32 %v68, %v76
    %v85 = vmul.f32 %v69, %v77
    %v86 = vmul.f32 %v70, %v78
    %v87 = vmul.f32 %v71, %v79
    %v88 = vadd.f32 %v56, %v80
    %v89 = vadd.f32 %v57, %v81
    %v90 = vadd.f32 %v58, %v82
    %v91 = vadd.f32 %v59, %v83
    %v92 = vadd.f32 %v60, %v84
    %v93 = vadd.f32 %v61, %v85
    %v94 = vadd.f32 %v62, %v86
    %v95 = vadd.f32 %v63, %v87
    %96 = vst [vmem:[#allocation2] sm:$0xff] %v88
    %97 = vst [vmem:[#allocation2 + $0x8] sm:$0xff] %v89
    %98 = vst [vmem:[#allocation2 + $0x10] sm:$0xff] %v90
    %99 = vst [vmem:[#allocation2 + $0x18] sm:$0xff] %v91
    %100 = vst [vmem:[#allocation2 + $0x20] sm:$0xff] %v92
    %101 = vst [vmem:[#allocation2 + $0x28] sm:$0xff] %v93
    %102 = vst [vmem:[#allocation2 + $0x30] sm:$0xff] %v94
    %103 = vst [vmem:[#allocation2 + $0x38] sm:$0xff] %v95
    // Predicated region
    $region22: #{tpu_custom_call.1} parent=1 // pred_check
      %p104 = pneg %p44
    $region23: #{tpu_custom_call.1} parent=1 // pred_check_branch
      %106 = sbr.rel (%p104) target = $region25
    $region24: #{tpu_custom_call.1} parent=1 // pred_region
      %v107 = vld [vmem:[#allocation2] sm:$0xff]
      %v108 = vld [vmem:[#allocation2 + $0x8] sm:$0xff]
      %v109 = vld [vmem:[#allocation2 + $0x10] sm:$0xff]
      %v110 = vld [vmem:[#allocation2 + $0x18] sm:$0xff]
      %v111 = vld [vmem:[#allocation2 + $0x20] sm:$0xff]
      %v112 = vld [vmem:[#allocation2 + $0x28] sm:$0xff]
      %v113 = vld [vmem:[#allocation2 + $0x30] sm:$0xff]
      %v114 = vld [vmem:[#allocation2 + $0x38] sm:$0xff]
      %v115 = vadd.f32 %v107, %v108
      %v116 = vadd.f32 %v115, %v109
      %v117 = vadd.f32 %v116, %v110
      %v118 = vadd.f32 %v117, %v111
      %v119 = vadd.f32 %v118, %v112
      %v120 = vadd.f32 %v119, %v113
      %v121 = vadd.f32 %v120, %v114
      %122 = vadd.xlane.f32.xlu0 %v121
      %v123 = vpop.xlane.xlu0 %122
      %v124 = vrot.slane %v123, 4
      %v125 = vadd.f32 %v123, %v124
      %v126 = vrot.slane %v125, 2
      %v127 = vadd.f32 %v125, %v126
      %v128 = vrot.slane %v127, 1
      %v129 = vadd.f32 %v127, %v128
      %s130 = vtos %v129
      %v131 = vstv %s130
      %vm132 = vcmask 0
      %133 = vst.msk [vmem:[#allocation8] sm:$0x1] %vm132, %v131
    $region25: #{tpu_custom_call.1} parent=1 // pred_fallthru
      _
    // Predicated region
    $region26: #{tpu_custom_call.1} parent=1 // pred_check
      _
    $region27: #{tpu_custom_call.1} parent=1 // pred_check_branch
      %135 = sbr.rel (0) target = $region29
    $region28: #{tpu_custom_call.1} parent=1 // pred_region
      %137 = vsyncadd [#allocation5], 0
      %s139 = sshll.u32 [#allocation8], 4
      %s140 = int_to_ptr.vmem [resolvable:$true] %s139
      %s141 = sshll.u32 %s2, 4
      %s142 = int_to_ptr.hbm [resolvable:$true] %s141
      %144 = dma.vmem_to_hbm [thread:$0]  %s140, 16, %s142, [#allocation5]
    $region29: #{tpu_custom_call.1} parent=1 // pred_fallthru
      _
    // Predicated region
    $region30: #{tpu_custom_call.1} parent=1 // pred_check
      _
    $region31: #{tpu_custom_call.1} parent=1 // pred_check_branch
      %146 = sbr.rel (0) target = $region33
    $region32: #{tpu_custom_call.1} parent=1 // pred_region
      %148 = dma.done [#allocation5], 16
    $region33: #{tpu_custom_call.1} parent=1 // pred_fallthru
      _
    %149 = vsyncpa [#allocation4], 1
    %150 = vsyncpa [#allocation7], 1
    %151 = vsyncpa [#allocation5], 1

</llo_original>
